<compile_context>
chip_gen: v6e
topology: v6e:2x2x1
jax: 0.10.0
libtpu: 0.0.40
codegen_flags: <defaults>
</compile_context>

<pallas_src>
import jax
import jax.numpy as jnp
from jax import lax
from jax.experimental import pallas as pl
from jax.experimental.pallas import tpu as pltpu


def _sobel_loss2_kernel(vi_ref, ir_ref, fu_ref, out_ref):
    bt, H, W = vi_ref.shape
    R = bt * H

    # Validity masks for +/-1 shifts (zero padding; the row masks also
    # decouple the bt images stacked along the sublane axis).
    hrow = lax.broadcasted_iota(jnp.int32, (bt, H, W), 1).reshape(R, W)
    col = lax.broadcasted_iota(jnp.int32, (R, W), 1)
    row_p_ok = hrow < (H - 1)   # x[i+1, :] in-bounds within its image
    row_m_ok = hrow > 0         # x[i-1, :] in-bounds within its image
    col_p_ok = col < (W - 1)    # x[:, j+1] in-bounds
    col_m_ok = col > 0          # x[:, j-1] in-bounds

    def shift(x, d, axis, ok):
        # y[..., i, ...] = x[..., i+d, ...] with zero fill outside the block.
        n = x.shape[axis]
        return jnp.where(ok, pltpu.roll(x, (-d) % n, axis), 0.0)

    def grad_x(ref):
        # Kx = [1,2,1]^T (rows) (x) [-1,0,1] (cols), cross-correlation, pad=1.
        x = ref[...].reshape(R, W)
        c = shift(x, -1, 0, row_m_ok) + 2.0 * x + shift(x, 1, 0, row_p_ok)
        return jnp.abs(shift(c, 1, 1, col_p_ok) - shift(c, -1, 1, col_m_ok))

    def grad_y(ref):
        # Ky = [1,0,-1]^T (rows) (x) [1,2,1] (cols), cross-correlation, pad=1.
        x = ref[...].reshape(R, W)
        c = shift(x, -1, 0, row_m_ok) - shift(x, 1, 0, row_p_ok)
        return jnp.abs(shift(c, -1, 1, col_m_ok) + 2.0 * c + shift(c, 1, 1, col_p_ok))

    # Direction x, then direction y (sequential -> fewer live intermediates).
    lx = jnp.abs(jnp.maximum(grad_x(vi_ref), grad_x(ir_ref)) - grad_x(fu_ref))
    partial = jnp.sum(lx)
    ly = jnp.abs(jnp.maximum(grad_y(vi_ref), grad_y(ir_ref)) - grad_y(fu_ref))
    partial = partial + jnp.sum(ly)

    # Per-step partial written into an independent (1, 8, 128) tile: scalar at
    # (0, 0, 0), zeros elsewhere (exact wrapper-side sum, full unmasked store,
    # no serial accumulator -> the grid axis stays 'parallel').
    rr = lax.broadcasted_iota(jnp.int32, (1, 8, 128), 1)
    cc = lax.broadcasted_iota(jnp.int32, (1, 8, 128), 2)
    out_ref[...] = jnp.where((rr == 0) & (cc == 0), partial, 0.0)


def _vmem_limit_bytes():
    """Per-generation VMEM limit with headroom (v5e/v6e: 96 MiB, v7x: 48 MiB)."""
    cap = 128 * 1024 * 1024
    try:
        cap = int(pltpu.get_tpu_info().vmem_capacity_bytes)
    except Exception:
        pass
    return min((cap * 3) // 4, 96 * 1024 * 1024)


def _pick_block_batch(n, h, w, vmem_limit_bytes):
    """Largest divisor bt of n (capped so grid_n >= 2 when n >= 2) whose
    per-step footprint fits in ~half the VMEM limit."""
    budget = vmem_limit_bytes // 2
    bt_cap = n if n < 2 else max(1, n // 2)   # keep >= 2 grid steps (megacore)
    best = 1
    for d in range(1, bt_cap + 1):
        if n % d:
            continue
        s = d * h * w
        # 3 double-buffered f32 input blocks + ~8 live f32 intermediates/masks.
        footprint = 3 * 2 * 4 * s + 8 * 4 * s
        if footprint <= budget:
            best = d
    return best


def sobel_loss2(img_vi, img_ir, img_fu, *, reduction='mean', loss_weight=1.0):
    assert img_vi.shape == img_ir.shape == img_fu.shape
    N, C, H, W = img_vi.shape
    assert C == 1, "Sobelxy's (1,1,3,3) filters imply single-channel input"
    if reduction not in ('mean', 'sum'):
        # TODO(synk): reduction='none' returns a per-element map in PyTorch;
        # only the scalar reductions are implemented here.
        raise NotImplementedError(f"reduction={reduction!r} not supported")

    vi = img_vi.reshape(N, H, W).astype(jnp.float32)
    ir = img_ir.reshape(N, H, W).astype(jnp.float32)
    fu = img_fu.reshape(N, H, W).astype(jnp.float32)

    vmem_limit = _vmem_limit_bytes()
    bt = _pick_block_batch(N, H, W, vmem_limit)
    grid_n = N // bt

    partials = pl.pallas_call(
        _sobel_loss2_kernel,
        out_shape=jax.ShapeDtypeStruct((grid_n, 8, 128), jnp.float32),
        grid=(grid_n,),
        in_specs=[
            pl.BlockSpec((bt, H, W), lambda g: (g, 0, 0)),
            pl.BlockSpec((bt, H, W), lambda g: (g, 0, 0)),
            pl.BlockSpec((bt, H, W), lambda g: (g, 0, 0)),
        ],
        out_specs=pl.BlockSpec((1, 8, 128), lambda g: (g, 0, 0)),
        compiler_params=pltpu.CompilerParams(
            dimension_semantics=("parallel",),
            vmem_limit_bytes=vmem_limit),
    )(vi, ir, fu)

    total = jnp.sum(partials)
    if reduction == 'mean':
        scale = loss_weight / float(N * C * H * W)
    else:  # 'sum'
        scale = loss_weight
    return total * scale


def _sobel_loss2_ref(img_vi, img_ir, img_fu, *, reduction='mean',
                     loss_weight=1.0):
    """Pure-JAX reference (lax conv == PyTorch cross-correlation conv2d)."""
    kx = jnp.array([[-1., 0., 1.], [-2., 0., 2.], [-1., 0., 1.]],
                   jnp.float32)[None, None]
    ky = jnp.array([[1., 2., 1.], [0., 0., 0.], [-1., -2., -1.]],
                   jnp.float32)[None, None]

    def sobel(x):
        x = x.astype(jnp.float32)
        sx = lax.conv_general_dilated(x, kx, (1, 1), ((1, 1), (1, 1)),
                                      dimension_numbers=('NCHW', 'OIHW', 'NCHW'),
                                      precision=lax.Precision.HIGHEST)
        sy = lax.conv_general_dilated(x, ky, (1, 1), ((1, 1), (1, 1)),
                                      dimension_numbers=('NCHW', 'OIHW', 'NCHW'),
                                      precision=lax.Precision.HIGHEST)
        return jnp.abs(sx), jnp.abs(sy)

    vx, vy = sobel(img_vi)
    ix, iy = sobel(img_ir)
    fx, fy = sobel(img_fu)
    jx = jnp.maximum(vx, ix)
    jy = jnp.maximum(vy, iy)
    if reduction == 'mean':
        loss = jnp.mean(jnp.abs(jx - fx)) + jnp.mean(jnp.abs(jy - fy))
    else:
        loss = jnp.sum(jnp.abs(jx - fx)) + jnp.sum(jnp.abs(jy - fy))
    return loss * loss_weight


if __name__ == "__main__":
    key = jax.random.PRNGKey(0)
    k1, k2, k3 = jax.random.split(key, 3)
    # Small shapes consistent with the module: N=2, C=1 (single-channel Sobel),
    # H=16, W=128 (lane-friendly small image).
    shape = (2, 1, 16, 128)
    img_vi = jax.random.uniform(k1, shape, dtype=jnp.float32)
    img_ir = jax.random.uniform(k2, shape, dtype=jnp.float32)
    img_fu = jax.random.uniform(k3, shape, dtype=jnp.float32)

    loss = sobel_loss2(img_vi, img_ir, img_fu)
    loss = jax.block_until_ready(loss)

    ref = _sobel_loss2_ref(img_vi, img_ir, img_fu)
    assert jnp.allclose(loss, ref, rtol=1e-4, atol=1e-5), (loss, ref)

    print("KERNEL_OK")
</pallas_src>

<mosaic_0001>
module attributes {stable_mosaic.version = 11 : i64} {
  func.func @_sobel_loss2_kernel(%arg0: i32, %arg1: memref<1x16x128xf32, #tpu.memory_space<vmem>>, %arg2: memref<1x16x128xf32, #tpu.memory_space<vmem>>, %arg3: memref<1x16x128xf32, #tpu.memory_space<vmem>>, %arg4: memref<1x8x128xf32, #tpu.memory_space<vmem>>) attributes {dimension_semantics = [#tpu.dimension_semantics<parallel>], iteration_bounds = array<i64: 2>, scalar_prefetch = 0 : i64, scratch_operands = 0 : i64, tpu.core_type = #tpu.core_type<tc>, window_params = [{transform_indices = @transform_0, window_bounds = array<i64: 1, 16, 128>}, {transform_indices = @transform_1, window_bounds = array<i64: 1, 16, 128>}, {transform_indices = @transform_2, window_bounds = array<i64: 1, 16, 128>}, {transform_indices = @transform_3, window_bounds = array<i64: 1, 8, 128>}]} {
    %0 = tpu.iota {dimensions = array<i32: 1>} : vector<1x16x128xi32>
    %1 = vector.shape_cast %0 : vector<1x16x128xi32> to vector<16x128xi32>
    %2 = tpu.iota {dimensions = array<i32: 1>} : vector<16x128xi32>
    %c15_i32 = arith.constant 15 : i32
    %3 = vector.broadcast %c15_i32 : i32 to vector<16x128xi32>
    %4 = arith.cmpi slt, %1, %3 : vector<16x128xi32>
    %c0_i32 = arith.constant 0 : i32
    %5 = vector.broadcast %c0_i32 : i32 to vector<16x128xi32>
    %6 = arith.cmpi sgt, %1, %5 : vector<16x128xi32>
    %c127_i32 = arith.constant 127 : i32
    %7 = vector.broadcast %c127_i32 : i32 to vector<16x128xi32>
    %8 = arith.cmpi slt, %2, %7 : vector<16x128xi32>
    %c0_i32_0 = arith.constant 0 : i32
    %9 = vector.broadcast %c0_i32_0 : i32 to vector<16x128xi32>
    %10 = arith.cmpi sgt, %2, %9 : vector<16x128xi32>
    %c0 = arith.constant 0 : index
    %c0_1 = arith.constant 0 : index
    %c0_2 = arith.constant 0 : index
    %11 = vector.load %arg1[%c0, %c0_1, %c0_2] : memref<1x16x128xf32, #tpu.memory_space<vmem>>, vector<1x16x128xf32>
    %12 = vector.shape_cast %11 : vector<1x16x128xf32> to vector<16x128xf32>
    %c1_i32 = arith.constant 1 : i32
    %13 = tpu.dynamic_rotate %12 by %c1_i32 dim 0 : vector<16x128xf32>, i32 -> vector<16x128xf32>
    %cst = arith.constant 0.000000e+00 : f32
    %14 = vector.broadcast %cst : f32 to vector<16x128xf32>
    %15 = arith.select %6, %13, %14 : vector<16x128xi1>, vector<16x128xf32>
    %cst_3 = arith.constant 2.000000e+00 : f32
    %16 = vector.broadcast %cst_3 : f32 to vector<16x128xf32>
    %17 = arith.mulf %16, %12 : vector<16x128xf32>
    %18 = arith.addf %15, %17 : vector<16x128xf32>
    %c15_i32_4 = arith.constant 15 : i32
    %19 = tpu.dynamic_rotate %12 by %c15_i32_4 dim 0 : vector<16x128xf32>, i32 -> vector<16x128xf32>
    %cst_5 = arith.constant 0.000000e+00 : f32
    %20 = vector.broadcast %cst_5 : f32 to vector<16x128xf32>
    %21 = arith.select %4, %19, %20 : vector<16x128xi1>, vector<16x128xf32>
    %22 = arith.addf %18, %21 : vector<16x128xf32>
    %c127_i32_6 = arith.constant 127 : i32
    %23 = tpu.dynamic_rotate %22 by %c127_i32_6 dim 1 : vector<16x128xf32>, i32 -> vector<16x128xf32>
    %cst_7 = arith.constant 0.000000e+00 : f32
    %24 = vector.broadcast %cst_7 : f32 to vector<16x128xf32>
    %25 = arith.select %8, %23, %24 : vector<16x128xi1>, vector<16x128xf32>
    %c1_i32_8 = arith.constant 1 : i32
    %26 = tpu.dynamic_rotate %22 by %c1_i32_8 dim 1 : vector<16x128xf32>, i32 -> vector<16x128xf32>
    %cst_9 = arith.constant 0.000000e+00 : f32
    %27 = vector.broadcast %cst_9 : f32 to vector<16x128xf32>
    %28 = arith.select %10, %26, %27 : vector<16x128xi1>, vector<16x128xf32>
    %29 = arith.subf %25, %28 : vector<16x128xf32>
    %30 = math.absf %29 : vector<16x128xf32>
    %c0_10 = arith.constant 0 : index
    %c0_11 = arith.constant 0 : index
    %c0_12 = arith.constant 0 : index
    %31 = vector.load %arg2[%c0_10, %c0_11, %c0_12] : memref<1x16x128xf32, #tpu.memory_space<vmem>>, vector<1x16x128xf32>
    %32 = vector.shape_cast %31 : vector<1x16x128xf32> to vector<16x128xf32>
    %c1_i32_13 = arith.constant 1 : i32
    %33 = tpu.dynamic_rotate %32 by %c1_i32_13 dim 0 : vector<16x128xf32>, i32 -> vector<16x128xf32>
    %cst_14 = arith.constant 0.000000e+00 : f32
    %34 = vector.broadcast %cst_14 : f32 to vector<16x128xf32>
    %35 = arith.select %6, %33, %34 : vector<16x128xi1>, vector<16x128xf32>
    %cst_15 = arith.constant 2.000000e+00 : f32
    %36 = vector.broadcast %cst_15 : f32 to vector<16x128xf32>
    %37 = arith.mulf %36, %32 : vector<16x128xf32>
    %38 = arith.addf %35, %37 : vector<16x128xf32>
    %c15_i32_16 = arith.constant 15 : i32
    %39 = tpu.dynamic_rotate %32 by %c15_i32_16 dim 0 : vector<16x128xf32>, i32 -> vector<16x128xf32>
    %cst_17 = arith.constant 0.000000e+00 : f32
    %40 = vector.broadcast %cst_17 : f32 to vector<16x128xf32>
    %41 = arith.select %4, %39, %40 : vector<16x128xi1>, vector<16x128xf32>
    %42 = arith.addf %38, %41 : vector<16x128xf32>
    %c127_i32_18 = arith.constant 127 : i32
    %43 = tpu.dynamic_rotate %42 by %c127_i32_18 dim 1 : vector<16x128xf32>, i32 -> vector<16x128xf32>
    %cst_19 = arith.constant 0.000000e+00 : f32
    %44 = vector.broadcast %cst_19 : f32 to vector<16x128xf32>
    %45 = arith.select %8, %43, %44 : vector<16x128xi1>, vector<16x128xf32>
    %c1_i32_20 = arith.constant 1 : i32
    %46 = tpu.dynamic_rotate %42 by %c1_i32_20 dim 1 : vector<16x128xf32>, i32 -> vector<16x128xf32>
    %cst_21 = arith.constant 0.000000e+00 : f32
    %47 = vector.broadcast %cst_21 : f32 to vector<16x128xf32>
    %48 = arith.select %10, %46, %47 : vector<16x128xi1>, vector<16x128xf32>
    %49 = arith.subf %45, %48 : vector<16x128xf32>
    %50 = math.absf %49 : vector<16x128xf32>
    %51 = arith.maximumf %30, %50 : vector<16x128xf32>
    %c0_22 = arith.constant 0 : index
    %c0_23 = arith.constant 0 : index
    %c0_24 = arith.constant 0 : index
    %52 = vector.load %arg3[%c0_22, %c0_23, %c0_24] : memref<1x16x128xf32, #tpu.memory_space<vmem>>, vector<1x16x128xf32>
    %53 = vector.shape_cast %52 : vector<1x16x128xf32> to vector<16x128xf32>
    %c1_i32_25 = arith.constant 1 : i32
    %54 = tpu.dynamic_rotate %53 by %c1_i32_25 dim 0 : vector<16x128xf32>, i32 -> vector<16x128xf32>
    %cst_26 = arith.constant 0.000000e+00 : f32
    %55 = vector.broadcast %cst_26 : f32 to vector<16x128xf32>
    %56 = arith.select %6, %54, %55 : vector<16x128xi1>, vector<16x128xf32>
    %cst_27 = arith.constant 2.000000e+00 : f32
    %57 = vector.broadcast %cst_27 : f32 to vector<16x128xf32>
    %58 = arith.mulf %57, %53 : vector<16x128xf32>
    %59 = arith.addf %56, %58 : vector<16x128xf32>
    %c15_i32_28 = arith.constant 15 : i32
    %60 = tpu.dynamic_rotate %53 by %c15_i32_28 dim 0 : vector<16x128xf32>, i32 -> vector<16x128xf32>
    %cst_29 = arith.constant 0.000000e+00 : f32
    %61 = vector.broadcast %cst_29 : f32 to vector<16x128xf32>
    %62 = arith.select %4, %60, %61 : vector<16x128xi1>, vector<16x128xf32>
    %63 = arith.addf %59, %62 : vector<16x128xf32>
    %c127_i32_30 = arith.constant 127 : i32
    %64 = tpu.dynamic_rotate %63 by %c127_i32_30 dim 1 : vector<16x128xf32>, i32 -> vector<16x128xf32>
    %cst_31 = arith.constant 0.000000e+00 : f32
    %65 = vector.broadcast %cst_31 : f32 to vector<16x128xf32>
    %66 = arith.select %8, %64, %65 : vector<16x128xi1>, vector<16x128xf32>
    %c1_i32_32 = arith.constant 1 : i32
    %67 = tpu.dynamic_rotate %63 by %c1_i32_32 dim 1 : vector<16x128xf32>, i32 -> vector<16x128xf32>
    %cst_33 = arith.constant 0.000000e+00 : f32
    %68 = vector.broadcast %cst_33 : f32 to vector<16x128xf32>
    %69 = arith.select %10, %67, %68 : vector<16x128xi1>, vector<16x128xf32>
    %70 = arith.subf %66, %69 : vector<16x128xf32>
    %71 = math.absf %70 : vector<16x128xf32>
    %72 = arith.subf %51, %71 : vector<16x128xf32>
    %73 = math.absf %72 : vector<16x128xf32>
    %74 = vector.shape_cast %73 : vector<16x128xf32> to vector<1x16x128xf32>
    %cst_34 = arith.constant dense<0.000000e+00> : vector<1xf32>
    %75 = vector.multi_reduction <add>, %74, %cst_34 [1, 2] : vector<1x16x128xf32> to vector<1xf32>
    %76 = vector.shape_cast %75 : vector<1xf32> to vector<1x1x1xf32>
    %77 = vector.extract %76[0, 0, 0] : f32 from vector<1x1x1xf32>
    %c0_35 = arith.constant 0 : index
    %c0_36 = arith.constant 0 : index
    %c0_37 = arith.constant 0 : index
    %78 = vector.load %arg1[%c0_35, %c0_36, %c0_37] : memref<1x16x128xf32, #tpu.memory_space<vmem>>, vector<1x16x128xf32>
    %79 = vector.shape_cast %78 : vector<1x16x128xf32> to vector<16x128xf32>
    %c1_i32_38 = arith.constant 1 : i32
    %80 = tpu.dynamic_rotate %79 by %c1_i32_38 dim 0 : vector<16x128xf32>, i32 -> vector<16x128xf32>
    %cst_39 = arith.constant 0.000000e+00 : f32
    %81 = vector.broadcast %cst_39 : f32 to vector<16x128xf32>
    %82 = arith.select %6, %80, %81 : vector<16x128xi1>, vector<16x128xf32>
    %c15_i32_40 = arith.constant 15 : i32
    %83 = tpu.dynamic_rotate %79 by %c15_i32_40 dim 0 : vector<16x128xf32>, i32 -> vector<16x128xf32>
    %cst_41 = arith.constant 0.000000e+00 : f32
    %84 = vector.broadcast %cst_41 : f32 to vector<16x128xf32>
    %85 = arith.select %4, %83, %84 : vector<16x128xi1>, vector<16x128xf32>
    %86 = arith.subf %82, %85 : vector<16x128xf32>
    %c1_i32_42 = arith.constant 1 : i32
    %87 = tpu.dynamic_rotate %86 by %c1_i32_42 dim 1 : vector<16x128xf32>, i32 -> vector<16x128xf32>
    %cst_43 = arith.constant 0.000000e+00 : f32
    %88 = vector.broadcast %cst_43 : f32 to vector<16x128xf32>
    %89 = arith.select %10, %87, %88 : vector<16x128xi1>, vector<16x128xf32>
    %cst_44 = arith.constant 2.000000e+00 : f32
    %90 = vector.broadcast %cst_44 : f32 to vector<16x128xf32>
    %91 = arith.mulf %90, %86 : vector<16x128xf32>
    %92 = arith.addf %89, %91 : vector<16x128xf32>
    %c127_i32_45 = arith.constant 127 : i32
    %93 = tpu.dynamic_rotate %86 by %c127_i32_45 dim 1 : vector<16x128xf32>, i32 -> vector<16x128xf32>
    %cst_46 = arith.constant 0.000000e+00 : f32
    %94 = vector.broadcast %cst_46 : f32 to vector<16x128xf32>
    %95 = arith.select %8, %93, %94 : vector<16x128xi1>, vector<16x128xf32>
    %96 = arith.addf %92, %95 : vector<16x128xf32>
    %97 = math.absf %96 : vector<16x128xf32>
    %c0_47 = arith.constant 0 : index
    %c0_48 = arith.constant 0 : index
    %c0_49 = arith.constant 0 : index
    %98 = vector.load %arg2[%c0_47, %c0_48, %c0_49] : memref<1x16x128xf32, #tpu.memory_space<vmem>>, vector<1x16x128xf32>
    %99 = vector.shape_cast %98 : vector<1x16x128xf32> to vector<16x128xf32>
    %c1_i32_50 = arith.constant 1 : i32
    %100 = tpu.dynamic_rotate %99 by %c1_i32_50 dim 0 : vector<16x128xf32>, i32 -> vector<16x128xf32>
    %cst_51 = arith.constant 0.000000e+00 : f32
    %101 = vector.broadcast %cst_51 : f32 to vector<16x128xf32>
    %102 = arith.select %6, %100, %101 : vector<16x128xi1>, vector<16x128xf32>
    %c15_i32_52 = arith.constant 15 : i32
    %103 = tpu.dynamic_rotate %99 by %c15_i32_52 dim 0 : vector<16x128xf32>, i32 -> vector<16x128xf32>
    %cst_53 = arith.constant 0.000000e+00 : f32
    %104 = vector.broadcast %cst_53 : f32 to vector<16x128xf32>
    %105 = arith.select %4, %103, %104 : vector<16x128xi1>, vector<16x128xf32>
    %106 = arith.subf %102, %105 : vector<16x128xf32>
    %c1_i32_54 = arith.constant 1 : i32
    %107 = tpu.dynamic_rotate %106 by %c1_i32_54 dim 1 : vector<16x128xf32>, i32 -> vector<16x128xf32>
    %cst_55 = arith.constant 0.000000e+00 : f32
    %108 = vector.broadcast %cst_55 : f32 to vector<16x128xf32>
    %109 = arith.select %10, %107, %108 : vector<16x128xi1>, vector<16x128xf32>
    %cst_56 = arith.constant 2.000000e+00 : f32
    %110 = vector.broadcast %cst_56 : f32 to vector<16x128xf32>
    %111 = arith.mulf %110, %106 : vector<16x128xf32>
    %112 = arith.addf %109, %111 : vector<16x128xf32>
    %c127_i32_57 = arith.constant 127 : i32
    %113 = tpu.dynamic_rotate %106 by %c127_i32_57 dim 1 : vector<16x128xf32>, i32 -> vector<16x128xf32>
    %cst_58 = arith.constant 0.000000e+00 : f32
    %114 = vector.broadcast %cst_58 : f32 to vector<16x128xf32>
    %115 = arith.select %8, %113, %114 : vector<16x128xi1>, vector<16x128xf32>
    %116 = arith.addf %112, %115 : vector<16x128xf32>
    %117 = math.absf %116 : vector<16x128xf32>
    %118 = arith.maximumf %97, %117 : vector<16x128xf32>
    %c0_59 = arith.constant 0 : index
    %c0_60 = arith.constant 0 : index
    %c0_61 = arith.constant 0 : index
    %119 = vector.load %arg3[%c0_59, %c0_60, %c0_61] : memref<1x16x128xf32, #tpu.memory_space<vmem>>, vector<1x16x128xf32>
    %120 = vector.shape_cast %119 : vector<1x16x128xf32> to vector<16x128xf32>
    %c1_i32_62 = arith.constant 1 : i32
    %121 = tpu.dynamic_rotate %120 by %c1_i32_62 dim 0 : vector<16x128xf32>, i32 -> vector<16x128xf32>
    %cst_63 = arith.constant 0.000000e+00 : f32
    %122 = vector.broadcast %cst_63 : f32 to vector<16x128xf32>
    %123 = arith.select %6, %121, %122 : vector<16x128xi1>, vector<16x128xf32>
    %c15_i32_64 = arith.constant 15 : i32
    %124 = tpu.dynamic_rotate %120 by %c15_i32_64 dim 0 : vector<16x128xf32>, i32 -> vector<16x128xf32>
    %cst_65 = arith.constant 0.000000e+00 : f32
    %125 = vector.broadcast %cst_65 : f32 to vector<16x128xf32>
    %126 = arith.select %4, %124, %125 : vector<16x128xi1>, vector<16x128xf32>
    %127 = arith.subf %123, %126 : vector<16x128xf32>
    %c1_i32_66 = arith.constant 1 : i32
    %128 = tpu.dynamic_rotate %127 by %c1_i32_66 dim 1 : vector<16x128xf32>, i32 -> vector<16x128xf32>
    %cst_67 = arith.constant 0.000000e+00 : f32
    %129 = vector.broadcast %cst_67 : f32 to vector<16x128xf32>
    %130 = arith.select %10, %128, %129 : vector<16x128xi1>, vector<16x128xf32>
    %cst_68 = arith.constant 2.000000e+00 : f32
    %131 = vector.broadcast %cst_68 : f32 to vector<16x128xf32>
    %132 = arith.mulf %131, %127 : vector<16x128xf32>
    %133 = arith.addf %130, %132 : vector<16x128xf32>
    %c127_i32_69 = arith.constant 127 : i32
    %134 = tpu.dynamic_rotate %127 by %c127_i32_69 dim 1 : vector<16x128xf32>, i32 -> vector<16x128xf32>
    %cst_70 = arith.constant 0.000000e+00 : f32
    %135 = vector.broadcast %cst_70 : f32 to vector<16x128xf32>
    %136 = arith.select %8, %134, %135 : vector<16x128xi1>, vector<16x128xf32>
    %137 = arith.addf %133, %136 : vector<16x128xf32>
    %138 = math.absf %137 : vector<16x128xf32>
    %139 = arith.subf %118, %138 : vector<16x128xf32>
    %140 = math.absf %139 : vector<16x128xf32>
    %141 = vector.shape_cast %140 : vector<16x128xf32> to vector<1x16x128xf32>
    %cst_71 = arith.constant dense<0.000000e+00> : vector<1xf32>
    %142 = vector.multi_reduction <add>, %141, %cst_71 [1, 2] : vector<1x16x128xf32> to vector<1xf32>
    %143 = vector.shape_cast %142 : vector<1xf32> to vector<1x1x1xf32>
    %144 = vector.extract %143[0, 0, 0] : f32 from vector<1x1x1xf32>
    %145 = arith.addf %77, %144 : f32
    %146 = tpu.iota {dimensions = array<i32: 1>} : vector<1x8x128xi32>
    %147 = tpu.iota {dimensions = array<i32: 2>} : vector<1x8x128xi32>
    %c0_i32_72 = arith.constant 0 : i32
    %148 = vector.broadcast %c0_i32_72 : i32 to vector<1x8x128xi32>
    %149 = arith.cmpi eq, %146, %148 : vector<1x8x128xi32>
    %c0_i32_73 = arith.constant 0 : i32
    %150 = vector.broadcast %c0_i32_73 : i32 to vector<1x8x128xi32>
    %151 = arith.cmpi eq, %147, %150 : vector<1x8x128xi32>
    %152 = arith.andi %149, %151 : vector<1x8x128xi1>
    %cst_74 = arith.constant 0.000000e+00 : f32
    %153 = vector.broadcast %145 : f32 to vector<1x8x128xf32>
    %154 = vector.broadcast %cst_74 : f32 to vector<1x8x128xf32>
    %155 = arith.select %152, %153, %154 : vector<1x8x128xi1>, vector<1x8x128xf32>
    %c0_75 = arith.constant 0 : index
    %c0_76 = arith.constant 0 : index
    %c0_77 = arith.constant 0 : index
    %156 = vector.load %arg4[%c0_75, %c0_76, %c0_77] : memref<1x8x128xf32, #tpu.memory_space<vmem>>, vector<1x8x128xf32>
    tpu.vector_store %arg4[%c0_75, %c0_76, %c0_77], %155 {strides = array<i32>} : memref<1x8x128xf32, #tpu.memory_space<vmem>>, vector<1x8x128xf32>,
    return
  }
  func.func @transform_0(%arg0: i32) -> (i32, i32, i32) {
    %c0_i32 = arith.constant 0 : i32
    %c0_i32_0 = arith.constant 0 : i32
    %c0_i32_1 = arith.constant 0 : i32
    return %arg0, %c0_i32, %c0_i32_0 : i32, i32, i32
  }
  func.func @transform_1(%arg0: i32) -> (i32, i32, i32) {
    %c0_i32 = arith.constant 0 : i32
    %c0_i32_0 = arith.constant 0 : i32
    %c0_i32_1 = arith.constant 0 : i32
    return %arg0, %c0_i32, %c0_i32_0 : i32, i32, i32
  }
  func.func @transform_2(%arg0: i32) -> (i32, i32, i32) {
    %c0_i32 = arith.constant 0 : i32
    %c0_i32_0 = arith.constant 0 : i32
    %c0_i32_1 = arith.constant 0 : i32
    return %arg0, %c0_i32, %c0_i32_0 : i32, i32, i32
  }
  func.func @transform_3(%arg0: i32) -> (i32, i32, i32) {
    %c0_i32 = arith.constant 0 : i32
    %c0_i32_0 = arith.constant 0 : i32
    %c0_i32_1 = arith.constant 0 : i32
    return %arg0, %c0_i32, %c0_i32_0 : i32, i32, i32
  }
}

</mosaic_0001>

<llo_original>
// kernel: tpu_custom_call.1
$region0: #{tpu_custom_call.1}
  #allocation0 [shape = 'u32[]', space=smem, size = 0x4, offset = 0x4, fixed_abs, tag = 'smem constant byte address 0x4 - core index']
  #allocation1 [shape = 'u32[144,128]{1,0:T(1,128)}', space=vmem, size = 0x12000, scoped, tag = 'internal scratch']
  %s0 = inlined_call_operand.hbm [shape: f32[2,16,128], index: 0, kind: input, shape index: {}]
  %s1 = inlined_call_operand.hbm [shape: f32[2,16,128], index: 1, kind: input, shape index: {}]
  %s2 = inlined_call_operand.hbm [shape: f32[2,16,128], index: 2, kind: input, shape index: {}]
  %s3 = inlined_call_operand.hbm [shape: f32[2,8,128], index: 3, kind: output, shape index: {}]
  %s4 = sld [smem:[#allocation0]]
  $region57: #{tpu_custom_call.1} parent=0
    _
  %s6 = ssub.s32 1, %s4
  %s7 = scalar_select 0, %s6, %s4
  $region1: #{tpu_custom_call.1} parent=0
    #allocation2 [shape = 'u8[16384]{0}', space=vmem, size = 0x4000, scoped, tag = 'input window, operand 0']
    #allocation3 [shape = 's32[2]{0}', space=sflag, size = 0x8, scoped, tag = 'scoped memory for tpu_custom_call.1']
    #allocation4 [shape = 's32[2]{0}', space=sflag, size = 0x8, scoped, tag = 'scoped memory for tpu_custom_call.1']
    #allocation5 [shape = 'u8[16384]{0}', space=vmem, size = 0x4000, scoped, tag = 'input window, operand 1']
    #allocation6 [shape = 's32[2]{0}', space=sflag, size = 0x8, scoped, tag = 'scoped memory for tpu_custom_call.1']
    #allocation7 [shape = 'u8[16384]{0}', space=vmem, size = 0x4000, scoped, tag = 'input window, operand 2']
    #allocation8 [shape = 'u8[8192]{0}', space=vmem, size = 0x2000, scoped, tag = 'output window, operand 0']
    %8 = vsyncpa [#allocation3], 0
    %s9 = scalar_lea.sflag [#allocation3], 1
    %10 = vsyncpa %s9, 0
    %11 = vsyncpa [#allocation6], 0
    %s12 = scalar_lea.sflag [#allocation6], 1
    %13 = vsyncpa %s12, 0
    %14 = vsyncpa [#allocation4], 0
    %s15 = scalar_lea.sflag [#allocation4], 1
    %16 = vsyncpa %s15, 0
    loop: start=0, step=1, limit=4
    $region2: #{tpu_custom_call.1} parent=1 // loop_pre_header
      _
    $region3: #{tpu_custom_call.1} parent=1 // loop_header
      %s18 = sphi 0, %s22
      %p19 = scmp.ge.s32.totalorder %s18, 4
      %s28 = sphi 0, %s30
      %s31 = sphi 0, %s28
      %s32 = sphi 0, %s31
      %s48 = sphi 0, %s32
      %s54 = sphi 0, %s56
      %s57 = sphi 0, %s54
      %s58 = sphi 0, %s57
      %s74 = sphi 0, %s58
      %s80 = sphi 0, %s82
      %s83 = sphi 0, %s80
      %s84 = sphi 0, %s83
      %s100 = sphi 0, %s84
      %s106 = sphi 0, %s108
      %s109 = sphi 0, %s106
      %s110 = sphi 0, %s109
      %s126 = sphi 0, %s110
    $region4: #{tpu_custom_call.1} parent=1 // loop_header_branch
      %21 = sbr.rel (%p19) target = $region8
    $region5: #{tpu_custom_call.1} parent=1 // loop_body
      %s23 = ssub.s32 %s18, 1
      %s24 = ssub.s32 %s18, 2
      %s25 = sadd.s32 %s18, 1
      %s26 = ssub.s32 %s18, %s25
      %p27 = scmp.eq.s32.totalorder %s26, 0
      %s29 = sadd.s32 %s28, 1
      %s30 = scalar_select %p27, %s28, %s29
      %p33 = pneg %p27
      %p34 = scmp.eq.s32.totalorder %s18, 1
      %p35 = por %p33, %p34
      %p36 = scmp.ne.s32.totalorder %s28, %s31
      %p37 = scmp.eq.s32.totalorder %s18, 0
      %p38 = por %p36, %p37
      %p39 = scmp.ne.s32.totalorder %s28, %s31
      %p40 = scmp.eq.s32.totalorder %s23, 1
      %p41 = por %p39, %p40
      %p42 = scmp.ne.s32.totalorder %s31, %s32
      %p43 = scmp.eq.s32.totalorder %s23, 0
      %p44 = por %p42, %p43
      %p45 = scmp.ne.s32.totalorder %s31, %s32
      %p46 = scmp.eq.s32.totalorder %s24, 1
      %p47 = por %p45, %p46
      %p49 = scmp.ne.s32.totalorder %s32, %s48
      %p50 = scmp.eq.s32.totalorder %s24, 0
      %p51 = por %p49, %p50
      %s52 = ssub.s32 %s18, %s25
      %p53 = scmp.eq.s32.totalorder %s52, 0
      %s55 = sadd.s32 %s54, 1
      %s56 = scalar_select %p53, %s54, %s55
      %p59 = pneg %p53
      %p60 = scmp.eq.s32.totalorder %s18, 1
      %p61 = por %p59, %p60
      %p62 = scmp.ne.s32.totalorder %s54, %s57
      %p63 = scmp.eq.s32.totalorder %s18, 0
      %p64 = por %p62, %p63
      %p65 = scmp.ne.s32.totalorder %s54, %s57
      %p66 = scmp.eq.s32.totalorder %s23, 1
      %p67 = por %p65, %p66
      %p68 = scmp.ne.s32.totalorder %s57, %s58
      %p69 = scmp.eq.s32.totalorder %s23, 0
      %p70 = por %p68, %p69
      %p71 = scmp.ne.s32.totalorder %s57, %s58
      %p72 = scmp.eq.s32.totalorder %s24, 1
      %p73 = por %p71, %p72
      %p75 = scmp.ne.s32.totalorder %s58, %s74
      %p76 = scmp.eq.s32.totalorder %s24, 0
      %p77 = por %p75, %p76
      %s78 = ssub.s32 %s18, %s25
      %p79 = scmp.eq.s32.totalorder %s78, 0
      %s81 = sadd.s32 %s80, 1
      %s82 = scalar_select %p79, %s80, %s81
      %p85 = pneg %p79
      %p86 = scmp.eq.s32.totalorder %s18, 1
      %p87 = por %p85, %p86
      %p88 = scmp.ne.s32.totalorder %s80, %s83
      %p89 = scmp.eq.s32.totalorder %s18, 0
      %p90 = por %p88, %p89
      %p91 = scmp.ne.s32.totalorder %s80, %s83
      %p92 = scmp.eq.s32.totalorder %s23, 1
      %p93 = por %p91, %p92
      %p94 = scmp.ne.s32.totalorder %s83, %s84
      %p95 = scmp.eq.s32.totalorder %s23, 0
      %p96 = por %p94, %p95
      %p97 = scmp.ne.s32.totalorder %s83, %s84
      %p98 = scmp.eq.s32.totalorder %s24, 1
      %p99 = por %p97, %p98
      %p101 = scmp.ne.s32.totalorder %s84, %s100
      %p102 = scmp.eq.s32.totalorder %s24, 0
      %p103 = por %p101, %p102
      %s104 = ssub.s32 %s18, %s25
      %p105 = scmp.eq.s32.totalorder %s104, 0
      %s107 = sadd.s32 %s106, 1
      %s108 = scalar_select %p105, %s106, %s107
      %p111 = pneg %p105
      %p112 = scmp.eq.s32.totalorder %s18, 1
      %p113 = por %p111, %p112
      %p114 = scmp.ne.s32.totalorder %s106, %s109
      %p115 = scmp.eq.s32.totalorder %s18, 0
      %p116 = por %p114, %p115
      %p117 = scmp.ne.s32.totalorder %s106, %s109
      %p118 = scmp.eq.s32.totalorder %s23, 1
      %p119 = por %p117, %p118
      %p120 = scmp.ne.s32.totalorder %s109, %s110
      %p121 = scmp.eq.s32.totalorder %s23, 0
      %p122 = por %p120, %p121
      %p123 = scmp.ne.s32.totalorder %s109, %s110
      %p124 = scmp.eq.s32.totalorder %s24, 1
      %p125 = por %p123, %p124
      %p127 = scmp.ne.s32.totalorder %s110, %s126
      %p128 = scmp.eq.s32.totalorder %s24, 0
      %p129 = por %p127, %p128
      %p130 = scmp.le.s32.totalorder 1, %s18
      %p131 = scmp.lt.s32.totalorder %s18, 3
      %p132 = pnand %p130, %p131
      %p133 = pneg %p132
      // Predicated region
      $region9: #{tpu_custom_call.1} parent=5 // pred_check
        _
      $region10: #{tpu_custom_call.1} parent=5 // pred_check_branch
        %135 = sbr.rel (%p132) target = $region12
      $region11: #{tpu_custom_call.1} parent=5 // pred_region
        %s136 = ssub.s32 %s18, 1
      $region12: #{tpu_custom_call.1} parent=5 // pred_fallthru
        _
      %p137 = scmp.lt.s32.totalorder %s18, 2
      // Predicated region
      $region13: #{tpu_custom_call.1} parent=5 // pred_check
        %p138 = pneg %p137
      $region14: #{tpu_custom_call.1} parent=5 // pred_check_branch
        %140 = sbr.rel (%p138) target = $region16
      $region15: #{tpu_custom_call.1} parent=5 // pred_region
        // Predicated region
        $region17: #{tpu_custom_call.1} parent=15 // pred_check
          %p141 = pneg %p38
        $region18: #{tpu_custom_call.1} parent=15 // pred_check_branch
          %143 = sbr.rel (%p141) target = $region20
        $region19: #{tpu_custom_call.1} parent=15 // pred_region
          %s144 = sand.u32 %s28, 1
          %s145 = scalar_lea.sflag [#allocation3], %s144
          %s146 = sand.u32 %s28, 1
          %s147 = smul.addr %s146, 16
          %s148 = scalar_lea.vmem [#allocation2], %s147
          %s150 = ssub.s32 256, 256
          %151 = vsyncadd %s145, %s150
          %s152 = smul.addr %s18, 2
          %s153 = smul.addr %s152, 128
          %s154 = scalar_lea.hbm %s0, %s153
          %s155 = sshll.u32 %s148, 4
          %s156 = int_to_ptr.vmem [resolvable:$true] %s155
          %161 = dma.hbm_to_vmem [thread:$0]  %s154, 256, %s156, %s145, 128, 128, 8
        $region20: #{tpu_custom_call.1} parent=15 // pred_fallthru
          _
        // Predicated region
        $region21: #{tpu_custom_call.1} parent=15 // pred_check
          %p162 = pneg %p64
        $region22: #{tpu_custom_call.1} parent=15 // pred_check_branch
          %164 = sbr.rel (%p162) target = $region24
        $region23: #{tpu_custom_call.1} parent=15 // pred_region
          %s165 = sand.u32 %s18, 1
          %s166 = scalar_lea.sflag [#allocation6], %s165
          %s167 = sand.u32 %s54, 1
          %s168 = smul.addr %s167, 16
          %s169 = scalar_lea.vmem [#allocation5], %s168
          %s171 = ssub.s32 256, 256
          %172 = vsyncadd %s166, %s171
          %s173 = smul.addr %s18, 2
          %s174 = smul.addr %s173, 128
          %s175 = scalar_lea.hbm %s1, %s174
          %s176 = sshll.u32 %s169, 4
          %s177 = int_to_ptr.vmem [resolvable:$true] %s176
          %182 = dma.hbm_to_vmem [thread:$0]  %s175, 256, %s177, %s166, 128, 128, 8
        $region24: #{tpu_custom_call.1} parent=15 // pred_fallthru
          _
        // Predicated region
        $region25: #{tpu_custom_call.1} parent=15 // pred_check
          %p183 = pneg %p90
        $region26: #{tpu_custom_call.1} parent=15 // pred_check_branch
          %185 = sbr.rel (%p183) target = $region28
        $region27: #{tpu_custom_call.1} parent=15 // pred_region
          %s186 = sand.u32 %s18, 1
          %s187 = scalar_lea.sflag [#allocation6], %s186
          %s188 = sand.u32 %s80, 1
          %s189 = smul.addr %s188, 16
          %s190 = scalar_lea.vmem [#allocation7], %s189
          %s192 = ssub.s32 256, 256
          %193 = vsyncadd %s187, %s192
          %s194 = smul.addr %s18, 2
          %s195 = smul.addr %s194, 128
          %s196 = scalar_lea.hbm %s2, %s195
          %s197 = sshll.u32 %s190, 4
          %s198 = int_to_ptr.vmem [resolvable:$true] %s197
          %203 = dma.hbm_to_vmem [thread:$0]  %s196, 256, %s198, %s187, 128, 128, 8
        $region28: #{tpu_custom_call.1} parent=15 // pred_fallthru
          _
      $region16: #{tpu_custom_call.1} parent=5 // pred_fallthru
        _
      %p204 = scmp.le.s32.totalorder 1, %s18
      %p205 = scmp.lt.s32.totalorder %s18, 3
      %p206 = pnand %p204, %p205
      %p207 = pneg %p206
      // Predicated region
      $region29: #{tpu_custom_call.1} parent=5 // pred_check
        _
      $region30: #{tpu_custom_call.1} parent=5 // pred_check_branch
        %209 = sbr.rel (%p206) target = $region32
      $region31: #{tpu_custom_call.1} parent=5 // pred_region
        %s210 = ssub.s32 %s18, 1
        %s211 = sand.u32 %s31, 1
        %s212 = scalar_lea.sflag [#allocation3], %s211
        %s213 = sand.u32 %s31, 1
        %s214 = smul.addr %s213, 16
        %s215 = scalar_lea.vmem [#allocation2], %s214
        // Predicated region
        $region33: #{tpu_custom_call.1} parent=31 // pred_check
          %p216 = pneg %p44
        $region34: #{tpu_custom_call.1} parent=31 // pred_check_branch
          %218 = sbr.rel (%p216) target = $region36
        $region35: #{tpu_custom_call.1} parent=31 // pred_region
          %219 = dma.done %s212, 256
        $region36: #{tpu_custom_call.1} parent=31 // pred_fallthru
          _
        %s220 = sand.u32 %s23, 1
        %s221 = scalar_lea.sflag [#allocation6], %s220
        %s222 = sand.u32 %s57, 1
        %s223 = smul.addr %s222, 16
        %s224 = scalar_lea.vmem [#allocation5], %s223
        // Predicated region
        $region37: #{tpu_custom_call.1} parent=31 // pred_check
          %p225 = pneg %p70
        $region38: #{tpu_custom_call.1} parent=31 // pred_check_branch
          %227 = sbr.rel (%p225) target = $region40
        $region39: #{tpu_custom_call.1} parent=31 // pred_region
          %228 = dma.done %s221, 256
        $region40: #{tpu_custom_call.1} parent=31 // pred_fallthru
          _
        %s229 = sand.u32 %s23, 1
        %s230 = scalar_lea.sflag [#allocation6], %s229
        %s231 = sand.u32 %s83, 1
        %s232 = smul.addr %s231, 16
        %s233 = scalar_lea.vmem [#allocation7], %s232
        // Predicated region
        $region41: #{tpu_custom_call.1} parent=31 // pred_check
          %p234 = pneg %p96
        $region42: #{tpu_custom_call.1} parent=31 // pred_check_branch
          %236 = sbr.rel (%p234) target = $region44
        $region43: #{tpu_custom_call.1} parent=31 // pred_region
          %237 = dma.done %s230, 256
        $region44: #{tpu_custom_call.1} parent=31 // pred_fallthru
          _
        %s238 = sand.u32 %s31, 1
        %s239 = scalar_lea.sflag [#allocation3], %s238
        %s240 = sand.u32 %s31, 1
        %s241 = smul.addr %s240, 16
        %s242 = scalar_lea.vmem [#allocation2], %s241
        %p243 = pneg %p44
        %p244 = pneg %p41
        %s245 = sand.u32 %s23, 1
        %s246 = scalar_lea.sflag [#allocation6], %s245
        %s247 = sand.u32 %s57, 1
        %s248 = smul.addr %s247, 16
        %s249 = scalar_lea.vmem [#allocation5], %s248
        %p250 = pneg %p70
        %p251 = pneg %p67
        %s252 = sand.u32 %s23, 1
        %s253 = scalar_lea.sflag [#allocation6], %s252
        %s254 = sand.u32 %s83, 1
        %s255 = smul.addr %s254, 16
        %s256 = scalar_lea.vmem [#allocation7], %s255
        %p257 = pneg %p96
        %p258 = pneg %p93
        %p259 = pneg %p122
        %p260 = pneg %p119
        %s261 = sand.u32 %s109, 1
        %s262 = scalar_lea.sflag [#allocation4], %s261
        %s263 = sand.u32 %s109, 1
        %s264 = smul.addr %s263, 8
        %s265 = scalar_lea.vmem [#allocation8], %s264
        %v266 = vlaneseq
        %v267 = vshrl.u32 %v266, 7
        %v268 = vadd.s32 %v267, 8
        %v269 = vlaneseq
        %v270 = vand.u32 %v269, 127
        %vm271 = vcmp.lt.s32.totalorder %v267, 15
        %vm272 = vcmp.lt.s32.totalorder %v268, 15
        %vm273 = vcmp.gt.s32.totalorder %v267, 0
        %vm274 = vcmp.gt.s32.totalorder %v268, 0
        %vm275 = vcmp.lt.s32.totalorder %v270, 127
        %vm276 = vcmp.gt.s32.totalorder %v270, 0
        %v277 = vld [vmem:[%s215] sm:$0xff]
        %v278 = vld [vmem:[%s215 + $0x8] sm:$0xff]
        %v279 = vrot.slane %v277, 7
        %v280 = vrot.slane %v278, 7
        %vm281 = vcmp.lt.s32.totalorder %v267, 1
        %v282 = vsel %vm281, %v279, %v280
        %v283 = vsel %vm281, %v280, %v279
        %v284 = vsel %vm273, %v283, 0.0
        %v285 = vsel %vm274, %v282, 0.0
        %v286 = vmul.f32 %v277, 2.0
        %v287 = vmul.f32 %v278, 2.0
        %v288 = vadd.f32 %v284, %v286
        %v289 = vadd.f32 %v285, %v287
        %v290 = vrot.slane %v277, 1
        %v291 = vrot.slane %v278, 1
        %vm292 = vcmp.lt.s32.totalorder %v267, 7
        %v293 = vsel %vm292, %v290, %v291
        %v294 = vsel %vm292, %v291, %v290
        %v295 = vsel %vm271, %v293, 0.0
        %v296 = vsel %vm272, %v294, 0.0
        %v297 = vadd.f32 %v288, %v295
        %v298 = vadd.f32 %v289, %v296
        %299 = vrot.lane.b32.xlu0 %v297, 127
        %v300 = vpop.permute.xlu0 %299
        %301 = vrot.lane.b32.xlu0 %v298, 127
        %v302 = vpop.permute.xlu0 %301
        %v303 = vsel %vm275, %v300, 0.0
        %v304 = vsel %vm275, %v302, 0.0
        %305 = vrot.lane.b32.xlu0 %v297, 1
        %v306 = vpop.permute.xlu0 %305
        %307 = vrot.lane.b32.xlu0 %v298, 1
        %v308 = vpop.permute.xlu0 %307
        %v309 = vsel %vm276, %v306, 0.0
        %v310 = vsel %vm276, %v308, 0.0
        %v311 = vsub.f32 %v303, %v309
        %v312 = vsub.f32 %v304, %v310
        %v313 = vand.u32 2147483647, %v311
        %v314 = vand.u32 2147483647, %v312
        %v315 = vld [vmem:[%s224] sm:$0xff]
        %v316 = vld [vmem:[%s224 + $0x8] sm:$0xff]
        %v317 = vrot.slane %v315, 7
        %v318 = vrot.slane %v316, 7
        %v319 = vsel %vm281, %v317, %v318
        %v320 = vsel %vm281, %v318, %v317
        %v321 = vsel %vm273, %v320, 0.0
        %v322 = vsel %vm274, %v319, 0.0
        %v323 = vmul.f32 %v315, 2.0
        %v324 = vmul.f32 %v316, 2.0
        %v325 = vadd.f32 %v321, %v323
        %v326 = vadd.f32 %v322, %v324
        %v327 = vrot.slane %v315, 1
        %v328 = vrot.slane %v316, 1
        %v329 = vsel %vm292, %v327, %v328
        %v330 = vsel %vm292, %v328, %v327
        %v331 = vsel %vm271, %v329, 0.0
        %v332 = vsel %vm272, %v330, 0.0
        %v333 = vadd.f32 %v325, %v331
        %v334 = vadd.f32 %v326, %v332
        %335 = vrot.lane.b32.xlu0 %v333, 127
        %v336 = vpop.permute.xlu0 %335
        %337 = vrot.lane.b32.xlu0 %v334, 127
        %v338 = vpop.permute.xlu0 %337
        %v339 = vsel %vm275, %v336, 0.0
        %v340 = vsel %vm275, %v338, 0.0
        %341 = vrot.lane.b32.xlu0 %v333, 1
        %v342 = vpop.permute.xlu0 %341
        %343 = vrot.lane.b32.xlu0 %v334, 1
        %v344 = vpop.permute.xlu0 %343
        %v345 = vsel %vm276, %v342, 0.0
        %v346 = vsel %vm276, %v344, 0.0
        %v347 = vsub.f32 %v339, %v345
        %v348 = vsub.f32 %v340, %v346
        %v349 = vand.u32 2147483647, %v347
        %v350 = vand.u32 2147483647, %v348
        %v351 = vmax.f32 %v313, %v349
        %v352 = vmax.f32 %v314, %v350
        %v353 = vld [vmem:[%s233] sm:$0xff]
        %v354 = vld [vmem:[%s233 + $0x8] sm:$0xff]
        %v355 = vrot.slane %v353, 7
        %v356 = vrot.slane %v354, 7
        %v357 = vsel %vm281, %v355, %v356
        %v358 = vsel %vm281, %v356, %v355
        %v359 = vsel %vm273, %v358, 0.0
        %v360 = vsel %vm274, %v357, 0.0
        %v361 = vmul.f32 %v353, 2.0
        %v362 = vmul.f32 %v354, 2.0
        %v363 = vadd.f32 %v359, %v361
        %v364 = vadd.f32 %v360, %v362
        %v365 = vrot.slane %v353, 1
        %v366 = vrot.slane %v354, 1
        %v367 = vsel %vm292, %v365, %v366
        %v368 = vsel %vm292, %v366, %v365
        %v369 = vsel %vm271, %v367, 0.0
        %v370 = vsel %vm272, %v368, 0.0
        %v371 = vadd.f32 %v363, %v369
        %v372 = vadd.f32 %v364, %v370
        %373 = vrot.lane.b32.xlu0 %v371, 127
        %v374 = vpop.permute.xlu0 %373
        %375 = vrot.lane.b32.xlu0 %v372, 127
        %v376 = vpop.permute.xlu0 %375
        %v377 = vsel %vm275, %v374, 0.0
        %v378 = vsel %vm275, %v376, 0.0
        %379 = vrot.lane.b32.xlu0 %v371, 1
        %v380 = vpop.permute.xlu0 %379
        %381 = vrot.lane.b32.xlu0 %v372, 1
        %v382 = vpop.permute.xlu0 %381
        %v383 = vsel %vm276, %v380, 0.0
        %v384 = vsel %vm276, %v382, 0.0
        %v385 = vsub.f32 %v377, %v383
        %v386 = vsub.f32 %v378, %v384
        %v387 = vand.u32 2147483647, %v385
        %v388 = vand.u32 2147483647, %v386
        %v389 = vsub.f32 %v351, %v387
        %v390 = vsub.f32 %v352, %v388
        %v391 = vand.u32 2147483647, %v389
        %v392 = vand.u32 2147483647, %v390
        %v393 = vadd.f32 %v391, %v392
        %394 = vadd.xlane.f32.xlu0 %v393
        %v395 = vpop.xlane.xlu0 %394
        %v396 = vrot.slane %v395, 4
        %v397 = vadd.f32 %v395, %v396
        %v398 = vrot.slane %v397, 2
        %v399 = vadd.f32 %v397, %v398
        %v400 = vrot.slane %v399, 1
        %v401 = vadd.f32 %v399, %v400
        %s402 = vtos %v401
        %v403 = vsub.f32 %v284, %v295
        %v404 = vsub.f32 %v285, %v296
        %405 = vrot.lane.b32.xlu0 %v403, 1
        %v406 = vpop.permute.xlu0 %405
        %407 = vrot.lane.b32.xlu0 %v404, 1
        %v408 = vpop.permute.xlu0 %407
        %v409 = vsel %vm276, %v406, 0.0
        %v410 = vsel %vm276, %v408, 0.0
        %v411 = vmul.f32 %v403, 2.0
        %v412 = vmul.f32 %v404, 2.0
        %v413 = vadd.f32 %v409, %v411
        %v414 = vadd.f32 %v410, %v412
        %415 = vrot.lane.b32.xlu0 %v403, 127
        %v416 = vpop.permute.xlu0 %415
        %417 = vrot.lane.b32.xlu0 %v404, 127
        %v418 = vpop.permute.xlu0 %417
        %v419 = vsel %vm275, %v416, 0.0
        %v420 = vsel %vm275, %v418, 0.0
        %v421 = vadd.f32 %v413, %v419
        %v422 = vadd.f32 %v414, %v420
        %v423 = vand.u32 2147483647, %v421
        %v424 = vand.u32 2147483647, %v422
        %v425 = vsub.f32 %v321, %v331
        %v426 = vsub.f32 %v322, %v332
        %427 = vrot.lane.b32.xlu0 %v425, 1
        %v428 = vpop.permute.xlu0 %427
        %429 = vrot.lane.b32.xlu0 %v426, 1
        %v430 = vpop.permute.xlu0 %429
        %v431 = vsel %vm276, %v428, 0.0
        %v432 = vsel %vm276, %v430, 0.0
        %v433 = vmul.f32 %v425, 2.0
        %v434 = vmul.f32 %v426, 2.0
        %v435 = vadd.f32 %v431, %v433
        %v436 = vadd.f32 %v432, %v434
        %437 = vrot.lane.b32.xlu0 %v425, 127
        %v438 = vpop.permute.xlu0 %437
        %439 = vrot.lane.b32.xlu0 %v426, 127
        %v440 = vpop.permute.xlu0 %439
        %v441 = vsel %vm275, %v438, 0.0
        %v442 = vsel %vm275, %v440, 0.0
        %v443 = vadd.f32 %v435, %v441
        %v444 = vadd.f32 %v436, %v442
        %v445 = vand.u32 2147483647, %v443
        %v446 = vand.u32 2147483647, %v444
        %v447 = vmax.f32 %v423, %v445
        %v448 = vmax.f32 %v424, %v446
        %v449 = vsub.f32 %v359, %v369
        %v450 = vsub.f32 %v360, %v370
        %451 = vrot.lane.b32.xlu0 %v449, 1
        %v452 = vpop.permute.xlu0 %451
        %453 = vrot.lane.b32.xlu0 %v450, 1
        %v454 = vpop.permute.xlu0 %453
        %v455 = vsel %vm276, %v452, 0.0
        %v456 = vsel %vm276, %v454, 0.0
        %v457 = vmul.f32 %v449, 2.0
        %v458 = vmul.f32 %v450, 2.0
        %v459 = vadd.f32 %v455, %v457
        %v460 = vadd.f32 %v456, %v458
        %461 = vrot.lane.b32.xlu0 %v449, 127
        %v462 = vpop.permute.xlu0 %461
        %463 = vrot.lane.b32.xlu0 %v450, 127
        %v464 = vpop.permute.xlu0 %463
        %v465 = vsel %vm275, %v462, 0.0
        %v466 = vsel %vm275, %v464, 0.0
        %v467 = vadd.f32 %v459, %v465
        %v468 = vadd.f32 %v460, %v466
        %v469 = vand.u32 2147483647, %v467
        %v470 = vand.u32 2147483647, %v468
        %v471 = vsub.f32 %v447, %v469
        %v472 = vsub.f32 %v448, %v470
        %v473 = vand.u32 2147483647, %v471
        %v474 = vand.u32 2147483647, %v472
        %v475 = vadd.f32 %v473, %v474
        %476 = vadd.xlane.f32.xlu0 %v475
        %v477 = vpop.xlane.xlu0 %476
        %v478 = vrot.slane %v477, 4
        %v479 = vadd.f32 %v477, %v478
        %v480 = vrot.slane %v479, 2
        %v481 = vadd.f32 %v479, %v480
        %v482 = vrot.slane %v481, 1
        %v483 = vadd.f32 %v481, %v482
        %s484 = vtos %v483
        %s485 = sadd.f32 %s402, %s484
        %vm486 = vcmp.eq.s32.totalorder %v267, 0
        %vm487 = vcmp.eq.s32.totalorder %v270, 0
        %vm488 = vmand %vm486, %vm487
        %v489 = vstv %s485
        %v490 = vsel %vm488, %v489, 0.0
        %491 = vst [vmem:[%s265] sm:$0xff] %v490
        %s492 = sand.u32 %s109, 1
        %s493 = scalar_lea.sflag [#allocation4], %s492
        %s494 = sand.u32 %s109, 1
        %s495 = smul.addr %s494, 8
        %s496 = scalar_lea.vmem [#allocation8], %s495
        // Predicated region
        $region45: #{tpu_custom_call.1} parent=31 // pred_check
          %p497 = pneg %p119
        $region46: #{tpu_custom_call.1} parent=31 // pred_check_branch
          %499 = sbr.rel (%p497) target = $region48
        $region47: #{tpu_custom_call.1} parent=31 // pred_region
          %s501 = ssub.s32 128, 128
          %502 = vsyncadd %s493, %s501
          %s503 = smul.addr %s23, 128
          %s504 = scalar_lea.hbm %s3, %s503
          %s506 = sshll.u32 %s496, 4
          %s507 = int_to_ptr.vmem [resolvable:$true] %s506
          %509 = dma.vmem_to_hbm [thread:$0]  %s507, 128, %s504, %s493
        $region48: #{tpu_custom_call.1} parent=31 // pred_fallthru
          _
      $region32: #{tpu_custom_call.1} parent=5 // pred_fallthru
        _
      %p510 = scmp.le.s32.totalorder 2, %s18
      // Predicated region
      $region49: #{tpu_custom_call.1} parent=5 // pred_check
        %p511 = pneg %p510
      $region50: #{tpu_custom_call.1} parent=5 // pred_check_branch
        %513 = sbr.rel (%p511) target = $region52
      $region51: #{tpu_custom_call.1} parent=5 // pred_region
        %s514 = ssub.s32 %s18, 2
        // Predicated region
        $region53: #{tpu_custom_call.1} parent=51 // pred_check
          %p515 = pneg %p125
        $region54: #{tpu_custom_call.1} parent=51 // pred_check_branch
          %517 = sbr.rel (%p515) target = $region56
        $region55: #{tpu_custom_call.1} parent=51 // pred_region
          %s518 = sand.u32 %s110, 1
          %s519 = scalar_lea.sflag [#allocation4], %s518
          %s520 = sand.u32 %s110, 1
          %s521 = smul.addr %s520, 8
          %s522 = scalar_lea.vmem [#allocation8], %s521
          %523 = dma.done %s519, 128
        $region56: #{tpu_custom_call.1} parent=51 // pred_fallthru
          _
      $region52: #{tpu_custom_call.1} parent=5 // pred_fallthru
        _
    $region6: #{tpu_custom_call.1} parent=1 // loop_footer
      %s22 = sadd.s32 1, %s18
    $region7: #{tpu_custom_call.1} parent=1 // loop_footer_branch
      %17 = sbr.rel target = $region3
    $region8: #{tpu_custom_call.1} parent=1 // loop_exit
      _
    %524 = vsyncpa [#allocation3], 1
    %s525 = scalar_lea.sflag [#allocation3], 1
    %526 = vsyncpa %s525, 1
    %527 = vsyncpa [#allocation6], 1
    %s528 = scalar_lea.sflag [#allocation6], 1
    %529 = vsyncpa %s528, 1
    %530 = vsyncpa [#allocation4], 1
    %s531 = scalar_lea.sflag [#allocation4], 1
    %532 = vsyncpa %s531, 1

</llo_original>
